<compile_context>
chip_gen: v7x
topology: tpu7x:2x2x1
jax: 0.10.0
libtpu: 0.0.40
codegen_flags: <defaults>
</compile_context>

<pallas_src>
import functools

import jax
import jax.numpy as jnp
from jax.experimental import pallas as pl
from jax.experimental.pallas import tpu as pltpu


def _leaky_relu(h, slope):
    if 0.0 <= slope <= 1.0:
        return jnp.maximum(h, slope * h)       # exact LeakyReLU for slope in [0, 1]
    return jnp.where(h >= 0, h, slope * h)


def _mlp_kernel(*refs, n_layers, slope):
    """Fused MLP in the transposed (feature, batch) layout.

    refs = (x_ref, w1, b1, ..., wN, bN, o_ref)
      x_ref : (c_in,  block_b)   batch on the 128-lane axis
      w_l   : (out_l, in_l)      PyTorch nn.Linear weight layout
      b_l   : (out_l, 1)         column bias, broadcasts along lanes
      o_ref : (c_out, block_b)   lane-dense output tile
    """
    x_ref, o_ref = refs[0], refs[-1]
    wb = refs[1:-1]

    h = x_ref[...]
    for l in range(n_layers):
        w = wb[2 * l][...]
        b = wb[2 * l + 1][...]
        # y^T = W @ h^T + b   (f32 accumulation on the MXU)
        h = jnp.dot(w, h.astype(w.dtype), preferred_element_type=jnp.float32) + b
        if l != n_layers - 1:
            h = _leaky_relu(h, slope)
    o_ref[...] = h.astype(o_ref.dtype)


def _round_up(x, m):
    return ((x + m - 1) // m) * m


def _choose_block_b(batch, max_width):
    """Lane-dense batch tile: multiple of 128, VMEM-budget aware, >=2 grid steps
    whenever the batch allows (keeps both v7x TensorCores busy)."""
    bp = _round_up(batch, 128)
    if bp <= 256:
        return bp
    # ~2 live f32 activation slabs per row; keep them under ~16 MiB.
    cap = ((16 << 20) // (8 * max(max_width, 128))) // 128 * 128
    cap = max(1024, min(8192, cap))
    return min(cap, _round_up(bp // 2, 128))


@functools.partial(
    jax.jit,
    static_argnames=("block_b", "slope", "matmul_dtype", "vmem_limit_bytes"))
def vanilla_mlp_pallas(x, params, *, block_b=None, slope=0.01,
                       matmul_dtype=None,
                       vmem_limit_bytes=48 * 1024 * 1024):
    """Forward pass of VanillaMLP.

    x:      (B, in_channels) array.
    params: dict {w1,b1,...,wN,bN} in PyTorch nn.Linear layout
            (w_l: (out_features, in_features), b_l: (out_features,)).
    """
    B, c_in = x.shape
    out_dtype = x.dtype
    n_layers = len(params) // 2
    ws = [params[f"w{l}"] for l in range(1, n_layers + 1)]
    bs = [params[f"b{l}"] for l in range(1, n_layers + 1)]

    dims = [c_in] + [w.shape[0] for w in ws]
    for l, w in enumerate(ws):
        assert w.shape == (dims[l + 1], dims[l]), "weight shape mismatch"
        assert bs[l].shape == (dims[l + 1],), "bias shape mismatch"
    c_out = dims[-1]

    if block_b is None:
        block_b = _choose_block_b(B, max(dims))
    block_b = max(128, (block_b // 128) * 128)
    Bp = _round_up(B, block_b)

    # Pad batch to a tile multiple, then present it transposed so the batch is
    # the 128-lane axis.  Pure layout plumbing; fused by XLA under jit.
    if Bp != B:
        x = jnp.pad(x, ((0, Bp - B), (0, 0)))
    xt = x.T                                              # (c_in, Bp)

    if matmul_dtype is not None:
        ws = [w.astype(matmul_dtype) for w in ws]         # x is cast in-kernel

    # Biases as (ch, 1) f32 columns: broadcast along lanes inside the kernel.
    b_cols = [b.reshape(-1, 1).astype(jnp.float32) for b in bs]

    grid = (Bp // block_b,)

    in_specs = [pl.BlockSpec((c_in, block_b), lambda i: (0, i))]   # streaming x^T
    operands = [xt]
    for w, b in zip(ws, b_cols):
        in_specs.append(pl.BlockSpec(w.shape, lambda i: (0, 0)))   # VMEM-resident
        in_specs.append(pl.BlockSpec(b.shape, lambda i: (0, 0)))   # VMEM-resident
        operands.extend([w, b])

    flops = 2 * Bp * sum(dims[l] * dims[l + 1] for l in range(n_layers))
    bytes_accessed = (
        xt.size * xt.dtype.itemsize
        + Bp * c_out * jnp.dtype(out_dtype).itemsize
        + sum(w.size * w.dtype.itemsize for w in ws)
        + sum(b.size * 4 for b in b_cols))

    out_t = pl.pallas_call(
        functools.partial(_mlp_kernel, n_layers=n_layers, slope=slope),
        out_shape=jax.ShapeDtypeStruct((c_out, Bp), out_dtype),
        grid_spec=pltpu.PrefetchScalarGridSpec(
            num_scalar_prefetch=0,
            grid=grid,
            in_specs=in_specs,
            out_specs=pl.BlockSpec((c_out, block_b), lambda i: (0, i)),
        ),
        compiler_params=pltpu.CompilerParams(
            dimension_semantics=("parallel",),
            vmem_limit_bytes=vmem_limit_bytes),
        cost_estimate=pl.CostEstimate(
            flops=int(flops), transcendentals=0,
            bytes_accessed=int(bytes_accessed)),
    )(*operands)

    # back to (B, c_out); drop padded rows (fused with the transpose under jit)
    return out_t.T[:B]


def init_params(key, in_channels, out_channels, channels=(32, 32)):
    """Synthetic nn.Linear-style init (weight: (out_features, in_features))."""
    dims = [in_channels, *channels, out_channels]
    params = {}
    for l in range(len(dims) - 1):
        fan_in, fan_out = dims[l], dims[l + 1]
        key, kw, kb = jax.random.split(key, 3)
        bound = 1.0 / (fan_in ** 0.5)
        params[f"w{l + 1}"] = jax.random.uniform(
            kw, (fan_out, fan_in), jnp.float32, -bound, bound)
        params[f"b{l + 1}"] = jax.random.uniform(
            kb, (fan_out,), jnp.float32, -bound, bound)
    return params


def vanilla_mlp_ref(x, params, slope=0.01):
    n_layers = len(params) // 2
    h = x
    for l in range(1, n_layers + 1):
        h = h @ params[f"w{l}"].T + params[f"b{l}"]
        if l != n_layers:
            h = jnp.where(h >= 0, h, slope * h)
    return h


if __name__ == "__main__":
    key = jax.random.PRNGKey(0)
    in_channels, out_channels = 4, 3
    channels = (32, 32)          # module default is (256, 256); small for the demo
    batch = 1024                 # -> two lane-dense 512-row tiles (grid of 2)

    kx, kp = jax.random.split(key)
    x = jax.random.normal(kx, (batch, in_channels), jnp.float32)
    params = init_params(kp, in_channels, out_channels, channels)

    out = jax.block_until_ready(vanilla_mlp_pallas(x, params))
    ref = vanilla_mlp_ref(x, params)
    assert out.shape == (batch, out_channels)
    assert jnp.allclose(out, ref, atol=1e-5, rtol=1e-5), "mismatch vs reference"

    # Ragged batch: exercises the pad-to-tile path (20 rows padded to 128).
    x_small = jax.random.normal(kx, (20, in_channels), jnp.float32)
    out_small = jax.block_until_ready(vanilla_mlp_pallas(x_small, params))
    ref_small = vanilla_mlp_ref(x_small, params)
    assert out_small.shape == (20, out_channels)
    assert jnp.allclose(out_small, ref_small, atol=1e-5, rtol=1e-5), "ragged mismatch"

    print("KERNEL_OK")
</pallas_src>

<mosaic_0001>
module attributes {stable_mosaic.version = 11 : i64} {
  func.func @_mlp_kernel(%arg0: i32, %arg1: memref<4x512xf32, #tpu.memory_space<vmem>>, %arg2: memref<32x4xf32, #tpu.memory_space<vmem>>, %arg3: memref<32x1xf32, #tpu.memory_space<vmem>>, %arg4: memref<32x32xf32, #tpu.memory_space<vmem>>, %arg5: memref<32x1xf32, #tpu.memory_space<vmem>>, %arg6: memref<3x32xf32, #tpu.memory_space<vmem>>, %arg7: memref<3x1xf32, #tpu.memory_space<vmem>>, %arg8: memref<3x512xf32, #tpu.memory_space<vmem>>) attributes {dimension_semantics = [#tpu.dimension_semantics<parallel>], iteration_bounds = array<i64: 2>, scalar_prefetch = 0 : i64, scratch_operands = 0 : i64, tpu.core_type = #tpu.core_type<tc>, window_params = [{transform_indices = @transform_0, window_bounds = array<i64: 4, 512>}, {pipeline_mode = #tpu.pipeline_mode<synchronous>, transform_indices = @transform_1, window_bounds = array<i64: 32, 4>}, {pipeline_mode = #tpu.pipeline_mode<synchronous>, transform_indices = @transform_2, window_bounds = array<i64: 32, 1>}, {pipeline_mode = #tpu.pipeline_mode<synchronous>, transform_indices = @transform_3, window_bounds = array<i64: 32, 32>}, {pipeline_mode = #tpu.pipeline_mode<synchronous>, transform_indices = @transform_4, window_bounds = array<i64: 32, 1>}, {pipeline_mode = #tpu.pipeline_mode<synchronous>, transform_indices = @transform_5, window_bounds = array<i64: 3, 32>}, {pipeline_mode = #tpu.pipeline_mode<synchronous>, transform_indices = @transform_6, window_bounds = array<i64: 3, 1>}, {transform_indices = @transform_7, window_bounds = array<i64: 3, 512>}]} {
    %c0 = arith.constant 0 : index
    %c0_0 = arith.constant 0 : index
    %0 = vector.load %arg1[%c0, %c0_0] : memref<4x512xf32, #tpu.memory_space<vmem>>, vector<4x512xf32>
    %c0_1 = arith.constant 0 : index
    %c0_2 = arith.constant 0 : index
    %1 = vector.load %arg2[%c0_1, %c0_2] : memref<32x4xf32, #tpu.memory_space<vmem>>, vector<32x4xf32>
    %c0_3 = arith.constant 0 : index
    %c0_4 = arith.constant 0 : index
    %2 = vector.load %arg3[%c0_3, %c0_4] : memref<32x1xf32, #tpu.memory_space<vmem>>, vector<32x1xf32>
    %cst = arith.constant dense<0.000000e+00> : vector<32x512xf32>
    %3 = tpu.matmul %1, %0, %cst {dimension_numbers = #tpu.dot_dimension_numbers<[1], [0], [0], [1], [0, 0, 1, 1], [], []>} : vector<32x4xf32>, vector<4x512xf32>, vector<32x512xf32> -> vector<32x512xf32>
    %4 = vector.broadcast %2 : vector<32x1xf32> to vector<32x512xf32>
    %5 = arith.addf %3, %4 : vector<32x512xf32>
    %cst_5 = arith.constant 0.00999999977 : f32
    %6 = vector.broadcast %cst_5 : f32 to vector<32x512xf32>
    %7 = arith.mulf %6, %5 : vector<32x512xf32>
    %8 = arith.maximumf %5, %7 : vector<32x512xf32>
    %c0_6 = arith.constant 0 : index
    %c0_7 = arith.constant 0 : index
    %9 = vector.load %arg4[%c0_6, %c0_7] : memref<32x32xf32, #tpu.memory_space<vmem>>, vector<32x32xf32>
    %c0_8 = arith.constant 0 : index
    %c0_9 = arith.constant 0 : index
    %10 = vector.load %arg5[%c0_8, %c0_9] : memref<32x1xf32, #tpu.memory_space<vmem>>, vector<32x1xf32>
    %cst_10 = arith.constant dense<0.000000e+00> : vector<32x512xf32>
    %11 = tpu.matmul %9, %8, %cst_10 {dimension_numbers = #tpu.dot_dimension_numbers<[1], [0], [0], [1], [0, 0, 1, 1], [], []>} : vector<32x32xf32>, vector<32x512xf32>, vector<32x512xf32> -> vector<32x512xf32>
    %12 = vector.broadcast %10 : vector<32x1xf32> to vector<32x512xf32>
    %13 = arith.addf %11, %12 : vector<32x512xf32>
    %cst_11 = arith.constant 0.00999999977 : f32
    %14 = vector.broadcast %cst_11 : f32 to vector<32x512xf32>
    %15 = arith.mulf %14, %13 : vector<32x512xf32>
    %16 = arith.maximumf %13, %15 : vector<32x512xf32>
    %c0_12 = arith.constant 0 : index
    %c0_13 = arith.constant 0 : index
    %17 = vector.load %arg6[%c0_12, %c0_13] : memref<3x32xf32, #tpu.memory_space<vmem>>, vector<3x32xf32>
    %c0_14 = arith.constant 0 : index
    %c0_15 = arith.constant 0 : index
    %18 = vector.load %arg7[%c0_14, %c0_15] : memref<3x1xf32, #tpu.memory_space<vmem>>, vector<3x1xf32>
    %cst_16 = arith.constant dense<0.000000e+00> : vector<3x512xf32>
    %19 = tpu.matmul %17, %16, %cst_16 {dimension_numbers = #tpu.dot_dimension_numbers<[1], [0], [0], [1], [0, 0, 1, 1], [], []>} : vector<3x32xf32>, vector<32x512xf32>, vector<3x512xf32> -> vector<3x512xf32>
    %20 = vector.broadcast %18 : vector<3x1xf32> to vector<3x512xf32>
    %21 = arith.addf %19, %20 : vector<3x512xf32>
    %c0_17 = arith.constant 0 : index
    %c0_18 = arith.constant 0 : index
    %22 = vector.load %arg8[%c0_17, %c0_18] : memref<3x512xf32, #tpu.memory_space<vmem>>, vector<3x512xf32>
    tpu.vector_store %arg8[%c0_17, %c0_18], %21 {strides = array<i32>} : memref<3x512xf32, #tpu.memory_space<vmem>>, vector<3x512xf32>,
    return
  }
  func.func @transform_0(%arg0: i32) -> (i32, i32) {
    %c0_i32 = arith.constant 0 : i32
    %c0_i32_0 = arith.constant 0 : i32
    return %c0_i32, %arg0 : i32, i32
  }
  func.func @transform_1(%arg0: i32) -> (i32, i32) {
    %c0_i32 = arith.constant 0 : i32
    %c0_i32_0 = arith.constant 0 : i32
    %c0_i32_1 = arith.constant 0 : i32
    return %c0_i32, %c0_i32_0 : i32, i32
  }
  func.func @transform_2(%arg0: i32) -> (i32, i32) {
    %c0_i32 = arith.constant 0 : i32
    %c0_i32_0 = arith.constant 0 : i32
    %c0_i32_1 = arith.constant 0 : i32
    return %c0_i32, %c0_i32_0 : i32, i32
  }
  func.func @transform_3(%arg0: i32) -> (i32, i32) {
    %c0_i32 = arith.constant 0 : i32
    %c0_i32_0 = arith.constant 0 : i32
    %c0_i32_1 = arith.constant 0 : i32
    return %c0_i32, %c0_i32_0 : i32, i32
  }
  func.func @transform_4(%arg0: i32) -> (i32, i32) {
    %c0_i32 = arith.constant 0 : i32
    %c0_i32_0 = arith.constant 0 : i32
    %c0_i32_1 = arith.constant 0 : i32
    return %c0_i32, %c0_i32_0 : i32, i32
  }
  func.func @transform_5(%arg0: i32) -> (i32, i32) {
    %c0_i32 = arith.constant 0 : i32
    %c0_i32_0 = arith.constant 0 : i32
    %c0_i32_1 = arith.constant 0 : i32
    return %c0_i32, %c0_i32_0 : i32, i32
  }
  func.func @transform_6(%arg0: i32) -> (i32, i32) {
    %c0_i32 = arith.constant 0 : i32
    %c0_i32_0 = arith.constant 0 : i32
    %c0_i32_1 = arith.constant 0 : i32
    return %c0_i32, %c0_i32_0 : i32, i32
  }
  func.func @transform_7(%arg0: i32) -> (i32, i32) {
    %c0_i32 = arith.constant 0 : i32
    %c0_i32_0 = arith.constant 0 : i32
    return %c0_i32, %arg0 : i32, i32
  }
}

</mosaic_0001>

<llo_original>
// kernel: vanilla_mlp_pallas.1
$region0: #{vanilla_mlp_pallas.1}
  #allocation0 [shape = 'u32[]', space=smem, size = 0x4, offset = 0x4, fixed_abs, tag = 'smem constant byte address 0x4 - core index']
  #allocation1 [shape = 'u32[144,128]{1,0:T(1,128)}', space=vmem, size = 0x12000, scoped, tag = 'internal scratch']
  %s0 = inlined_call_operand.vmem [shape: f32[4,1024], index: 0, kind: input, shape index: {}]
  %s1 = inlined_call_operand.vmem [shape: f32[32,4], index: 1, kind: input, shape index: {}]
  %s2 = inlined_call_operand.vmem [shape: f32[32,1], index: 2, kind: input, shape index: {}]
  %s3 = inlined_call_operand.vmem [shape: f32[32,32], index: 3, kind: input, shape index: {}]
  %s4 = inlined_call_operand.vmem [shape: f32[32,1], index: 4, kind: input, shape index: {}]
  %s5 = inlined_call_operand.vmem [shape: f32[3,32], index: 5, kind: input, shape index: {}]
  %s6 = inlined_call_operand.vmem [shape: f32[3,1], index: 6, kind: input, shape index: {}]
  %s7 = inlined_call_operand.hbm [shape: f32[3,1024], index: 7, kind: output, shape index: {}]
  %s8 = sld [smem:[#allocation0]]
  $region61: #{vanilla_mlp_pallas.1} parent=0
    _
  %s10 = ssub.s32 1, %s8
  %s11 = scalar_select 0, %s10, %s8
  $region1: #{vanilla_mlp_pallas.1} parent=0
    #allocation2 [shape = 'u8[16384]{0}', space=vmem, size = 0x4000, scoped, tag = 'output window, operand 0']
    #allocation3 [shape = 's32[2]{0}', space=sflag, size = 0x8, scoped, tag = 'scoped memory for vanilla_mlp_pallas.1']
    %12 = vsyncpa [#allocation3], 0
    %s13 = scalar_lea.sflag [#allocation3], 1
    %14 = vsyncpa %s13, 0
    loop: start=0, step=1, limit=4
    $region2: #{vanilla_mlp_pallas.1} parent=1 // loop_pre_header
      _
    $region3: #{vanilla_mlp_pallas.1} parent=1 // loop_header
      %s16 = sphi 0, %s20
      %p17 = scmp.ge.s32.totalorder %s16, 4
      %s26 = sphi 0, %s28
      %s29 = sphi 0, %s26
      %s30 = sphi 0, %s29
      %s46 = sphi 0, %s30
      %s50 = sphi 0, %s50
      %s52 = sphi 0, %s50
      %s53 = sphi 0, %s52
      %s67 = sphi 0, %s53
      %s71 = sphi 0, %s71
      %s73 = sphi 0, %s71
      %s74 = sphi 0, %s73
      %s88 = sphi 0, %s74
      %s92 = sphi 0, %s92
      %s94 = sphi 0, %s92
      %s95 = sphi 0, %s94
      %s109 = sphi 0, %s95
      %s113 = sphi 0, %s113
      %s115 = sphi 0, %s113
      %s116 = sphi 0, %s115
      %s130 = sphi 0, %s116
      %s134 = sphi 0, %s134
      %s136 = sphi 0, %s134
      %s137 = sphi 0, %s136
      %s151 = sphi 0, %s137
      %s155 = sphi 0, %s155
      %s157 = sphi 0, %s155
      %s158 = sphi 0, %s157
      %s172 = sphi 0, %s158
      %s178 = sphi 0, %s180
      %s181 = sphi 0, %s178
      %s182 = sphi 0, %s181
      %s198 = sphi 0, %s182
    $region4: #{vanilla_mlp_pallas.1} parent=1 // loop_header_branch
      %19 = sbr.rel (%p17) target = $region8
    $region5: #{vanilla_mlp_pallas.1} parent=1 // loop_body
      %s21 = ssub.s32 %s16, 1
      %s22 = ssub.s32 %s16, 2
      %s23 = sadd.s32 %s16, 1
      %s24 = ssub.s32 %s16, %s23
      %p25 = scmp.eq.s32.totalorder %s24, 0
      %s27 = sadd.s32 %s26, 1
      %s28 = scalar_select %p25, %s26, %s27
      %p31 = pneg %p25
      %p32 = scmp.eq.s32.totalorder %s16, 1
      %p33 = por %p31, %p32
      %p34 = scmp.ne.s32.totalorder %s26, %s29
      %p35 = scmp.eq.s32.totalorder %s16, 0
      %p36 = por %p34, %p35
      %p37 = scmp.ne.s32.totalorder %s26, %s29
      %p38 = scmp.eq.s32.totalorder %s21, 1
      %p39 = por %p37, %p38
      %p40 = scmp.ne.s32.totalorder %s29, %s30
      %p41 = scmp.eq.s32.totalorder %s21, 0
      %p42 = por %p40, %p41
      %p43 = scmp.ne.s32.totalorder %s29, %s30
      %p44 = scmp.eq.s32.totalorder %s22, 1
      %p45 = por %p43, %p44
      %p47 = scmp.ne.s32.totalorder %s30, %s46
      %p48 = scmp.eq.s32.totalorder %s22, 0
      %p49 = por %p47, %p48
      %s51 = sadd.s32 %s50, 1
      %p54 = scmp.eq.s32.totalorder %s16, 1
      %p55 = scmp.ne.s32.totalorder %s50, %s52
      %p56 = scmp.eq.s32.totalorder %s16, 0
      %p57 = por %p55, %p56
      %p58 = scmp.ne.s32.totalorder %s50, %s52
      %p59 = scmp.eq.s32.totalorder %s21, 1
      %p60 = por %p58, %p59
      %p61 = scmp.ne.s32.totalorder %s52, %s53
      %p62 = scmp.eq.s32.totalorder %s21, 0
      %p63 = por %p61, %p62
      %p64 = scmp.ne.s32.totalorder %s52, %s53
      %p65 = scmp.eq.s32.totalorder %s22, 1
      %p66 = por %p64, %p65
      %p68 = scmp.ne.s32.totalorder %s53, %s67
      %p69 = scmp.eq.s32.totalorder %s22, 0
      %p70 = por %p68, %p69
      %s72 = sadd.s32 %s71, 1
      %p75 = scmp.eq.s32.totalorder %s16, 1
      %p76 = scmp.ne.s32.totalorder %s71, %s73
      %p77 = scmp.eq.s32.totalorder %s16, 0
      %p78 = por %p76, %p77
      %p79 = scmp.ne.s32.totalorder %s71, %s73
      %p80 = scmp.eq.s32.totalorder %s21, 1
      %p81 = por %p79, %p80
      %p82 = scmp.ne.s32.totalorder %s73, %s74
      %p83 = scmp.eq.s32.totalorder %s21, 0
      %p84 = por %p82, %p83
      %p85 = scmp.ne.s32.totalorder %s73, %s74
      %p86 = scmp.eq.s32.totalorder %s22, 1
      %p87 = por %p85, %p86
      %p89 = scmp.ne.s32.totalorder %s74, %s88
      %p90 = scmp.eq.s32.totalorder %s22, 0
      %p91 = por %p89, %p90
      %s93 = sadd.s32 %s92, 1
      %p96 = scmp.eq.s32.totalorder %s16, 1
      %p97 = scmp.ne.s32.totalorder %s92, %s94
      %p98 = scmp.eq.s32.totalorder %s16, 0
      %p99 = por %p97, %p98
      %p100 = scmp.ne.s32.totalorder %s92, %s94
      %p101 = scmp.eq.s32.totalorder %s21, 1
      %p102 = por %p100, %p101
      %p103 = scmp.ne.s32.totalorder %s94, %s95
      %p104 = scmp.eq.s32.totalorder %s21, 0
      %p105 = por %p103, %p104
      %p106 = scmp.ne.s32.totalorder %s94, %s95
      %p107 = scmp.eq.s32.totalorder %s22, 1
      %p108 = por %p106, %p107
      %p110 = scmp.ne.s32.totalorder %s95, %s109
      %p111 = scmp.eq.s32.totalorder %s22, 0
      %p112 = por %p110, %p111
      %s114 = sadd.s32 %s113, 1
      %p117 = scmp.eq.s32.totalorder %s16, 1
      %p118 = scmp.ne.s32.totalorder %s113, %s115
      %p119 = scmp.eq.s32.totalorder %s16, 0
      %p120 = por %p118, %p119
      %p121 = scmp.ne.s32.totalorder %s113, %s115
      %p122 = scmp.eq.s32.totalorder %s21, 1
      %p123 = por %p121, %p122
      %p124 = scmp.ne.s32.totalorder %s115, %s116
      %p125 = scmp.eq.s32.totalorder %s21, 0
      %p126 = por %p124, %p125
      %p127 = scmp.ne.s32.totalorder %s115, %s116
      %p128 = scmp.eq.s32.totalorder %s22, 1
      %p129 = por %p127, %p128
      %p131 = scmp.ne.s32.totalorder %s116, %s130
      %p132 = scmp.eq.s32.totalorder %s22, 0
      %p133 = por %p131, %p132
      %s135 = sadd.s32 %s134, 1
      %p138 = scmp.eq.s32.totalorder %s16, 1
      %p139 = scmp.ne.s32.totalorder %s134, %s136
      %p140 = scmp.eq.s32.totalorder %s16, 0
      %p141 = por %p139, %p140
      %p142 = scmp.ne.s32.totalorder %s134, %s136
      %p143 = scmp.eq.s32.totalorder %s21, 1
      %p144 = por %p142, %p143
      %p145 = scmp.ne.s32.totalorder %s136, %s137
      %p146 = scmp.eq.s32.totalorder %s21, 0
      %p147 = por %p145, %p146
      %p148 = scmp.ne.s32.totalorder %s136, %s137
      %p149 = scmp.eq.s32.totalorder %s22, 1
      %p150 = por %p148, %p149
      %p152 = scmp.ne.s32.totalorder %s137, %s151
      %p153 = scmp.eq.s32.totalorder %s22, 0
      %p154 = por %p152, %p153
      %s156 = sadd.s32 %s155, 1
      %p159 = scmp.eq.s32.totalorder %s16, 1
      %p160 = scmp.ne.s32.totalorder %s155, %s157
      %p161 = scmp.eq.s32.totalorder %s16, 0
      %p162 = por %p160, %p161
      %p163 = scmp.ne.s32.totalorder %s155, %s157
      %p164 = scmp.eq.s32.totalorder %s21, 1
      %p165 = por %p163, %p164
      %p166 = scmp.ne.s32.totalorder %s157, %s158
      %p167 = scmp.eq.s32.totalorder %s21, 0
      %p168 = por %p166, %p167
      %p169 = scmp.ne.s32.totalorder %s157, %s158
      %p170 = scmp.eq.s32.totalorder %s22, 1
      %p171 = por %p169, %p170
      %p173 = scmp.ne.s32.totalorder %s158, %s172
      %p174 = scmp.eq.s32.totalorder %s22, 0
      %p175 = por %p173, %p174
      %s176 = ssub.s32 %s16, %s23
      %p177 = scmp.eq.s32.totalorder %s176, 0
      %s179 = sadd.s32 %s178, 1
      %s180 = scalar_select %p177, %s178, %s179
      %p183 = pneg %p177
      %p184 = scmp.eq.s32.totalorder %s16, 1
      %p185 = por %p183, %p184
      %p186 = scmp.ne.s32.totalorder %s178, %s181
      %p187 = scmp.eq.s32.totalorder %s16, 0
      %p188 = por %p186, %p187
      %p189 = scmp.ne.s32.totalorder %s178, %s181
      %p190 = scmp.eq.s32.totalorder %s21, 1
      %p191 = por %p189, %p190
      %p192 = scmp.ne.s32.totalorder %s181, %s182
      %p193 = scmp.eq.s32.totalorder %s21, 0
      %p194 = por %p192, %p193
      %p195 = scmp.ne.s32.totalorder %s181, %s182
      %p196 = scmp.eq.s32.totalorder %s22, 1
      %p197 = por %p195, %p196
      %p199 = scmp.ne.s32.totalorder %s182, %s198
      %p200 = scmp.eq.s32.totalorder %s22, 0
      %p201 = por %p199, %p200
      %p202 = scmp.le.s32.totalorder 1, %s16
      %p203 = scmp.lt.s32.totalorder %s16, 3
      %p204 = pnand %p202, %p203
      %p205 = pneg %p204
      // Predicated region
      $region9: #{vanilla_mlp_pallas.1} parent=5 // pred_check
        _
      $region10: #{vanilla_mlp_pallas.1} parent=5 // pred_check_branch
        %207 = sbr.rel (%p204) target = $region12
      $region11: #{vanilla_mlp_pallas.1} parent=5 // pred_region
        %s208 = ssub.s32 %s16, 1
        // Predicated region
        $region13: #{vanilla_mlp_pallas.1} parent=11 // pred_check
          %p209 = pneg %p63
        $region14: #{vanilla_mlp_pallas.1} parent=11 // pred_check_branch
          %211 = sbr.rel (%p209) target = $region16
        $region15: #{vanilla_mlp_pallas.1} parent=11 // pred_region
          _
        $region16: #{vanilla_mlp_pallas.1} parent=11 // pred_fallthru
          _
        // Predicated region
        $region17: #{vanilla_mlp_pallas.1} parent=11 // pred_check
          %p212 = pneg %p84
        $region18: #{vanilla_mlp_pallas.1} parent=11 // pred_check_branch
          %214 = sbr.rel (%p212) target = $region20
        $region19: #{vanilla_mlp_pallas.1} parent=11 // pred_region
          _
        $region20: #{vanilla_mlp_pallas.1} parent=11 // pred_fallthru
          _
        // Predicated region
        $region21: #{vanilla_mlp_pallas.1} parent=11 // pred_check
          %p215 = pneg %p105
        $region22: #{vanilla_mlp_pallas.1} parent=11 // pred_check_branch
          %217 = sbr.rel (%p215) target = $region24
        $region23: #{vanilla_mlp_pallas.1} parent=11 // pred_region
          _
        $region24: #{vanilla_mlp_pallas.1} parent=11 // pred_fallthru
          _
        // Predicated region
        $region25: #{vanilla_mlp_pallas.1} parent=11 // pred_check
          %p218 = pneg %p126
        $region26: #{vanilla_mlp_pallas.1} parent=11 // pred_check_branch
          %220 = sbr.rel (%p218) target = $region28
        $region27: #{vanilla_mlp_pallas.1} parent=11 // pred_region
          _
        $region28: #{vanilla_mlp_pallas.1} parent=11 // pred_fallthru
          _
        // Predicated region
        $region29: #{vanilla_mlp_pallas.1} parent=11 // pred_check
          %p221 = pneg %p147
        $region30: #{vanilla_mlp_pallas.1} parent=11 // pred_check_branch
          %223 = sbr.rel (%p221) target = $region32
        $region31: #{vanilla_mlp_pallas.1} parent=11 // pred_region
          _
        $region32: #{vanilla_mlp_pallas.1} parent=11 // pred_fallthru
          _
        // Predicated region
        $region33: #{vanilla_mlp_pallas.1} parent=11 // pred_check
          %p224 = pneg %p168
        $region34: #{vanilla_mlp_pallas.1} parent=11 // pred_check_branch
          %226 = sbr.rel (%p224) target = $region36
        $region35: #{vanilla_mlp_pallas.1} parent=11 // pred_region
          _
        $region36: #{vanilla_mlp_pallas.1} parent=11 // pred_fallthru
          _
      $region12: #{vanilla_mlp_pallas.1} parent=5 // pred_fallthru
        _
      %p227 = scmp.lt.s32.totalorder %s16, 2
      // Predicated region
      $region37: #{vanilla_mlp_pallas.1} parent=5 // pred_check
        %p228 = pneg %p227
      $region38: #{vanilla_mlp_pallas.1} parent=5 // pred_check_branch
        %230 = sbr.rel (%p228) target = $region40
      $region39: #{vanilla_mlp_pallas.1} parent=5 // pred_region
        // Predicated region
        $region41: #{vanilla_mlp_pallas.1} parent=39 // pred_check
          %p231 = pneg %p36
        $region42: #{vanilla_mlp_pallas.1} parent=39 // pred_check_branch
          %233 = sbr.rel (%p231) target = $region44
        $region43: #{vanilla_mlp_pallas.1} parent=39 // pred_region
          %s234 = smul.u32 4, %s16
          %p235 = scmp.lt.s32.totalorder %s234, 7
          %s236 = scalar_select %p235, %s234, 7
          %s237 = smul.addr %s236, 4
          %s238 = scalar_lea.vmem %s0, %s237
          %s239 = smul.u32 4, %s16
        $region44: #{vanilla_mlp_pallas.1} parent=39 // pred_fallthru
          _
      $region40: #{vanilla_mlp_pallas.1} parent=5 // pred_fallthru
        _
      %p240 = scmp.le.s32.totalorder 1, %s16
      %p241 = scmp.lt.s32.totalorder %s16, 3
      %p242 = pnand %p240, %p241
      %p243 = pneg %p242
      // Predicated region
      $region45: #{vanilla_mlp_pallas.1} parent=5 // pred_check
        _
      $region46: #{vanilla_mlp_pallas.1} parent=5 // pred_check_branch
        %245 = sbr.rel (%p242) target = $region48
      $region47: #{vanilla_mlp_pallas.1} parent=5 // pred_region
        %s246 = ssub.s32 %s16, 1
        %s247 = smul.u32 4, %s21
        %p248 = scmp.lt.s32.totalorder %s247, 7
        %s249 = scalar_select %p248, %s247, 7
        %s250 = smul.addr %s249, 4
        %s251 = scalar_lea.vmem %s0, %s250
        %p252 = pneg %p42
        %p253 = pneg %p39
        %p254 = pneg %p63
        %p255 = pneg %p60
        %p256 = pneg %p84
        %p257 = pneg %p81
        %p258 = pneg %p105
        %p259 = pneg %p102
        %p260 = pneg %p126
        %p261 = pneg %p123
        %p262 = pneg %p147
        %p263 = pneg %p144
        %p264 = pneg %p168
        %p265 = pneg %p165
        %p266 = pneg %p194
        %p267 = pneg %p191
        %s268 = sand.u32 %s181, 1
        %s269 = scalar_lea.sflag [#allocation3], %s268
        %s270 = sand.u32 %s181, 1
        %s271 = smul.addr %s270, 16
        %s272 = scalar_lea.vmem [#allocation2], %s271
        %s273 = smul.u32 4, %s21
        %p274 = scmp.lt.s32.totalorder %s273, 7
        %s275 = scalar_select %p274, %s273, 7
        %s276 = smul.addr %s275, 4
        %s277 = scalar_lea.vmem %s0, %s276
        %s278 = smul.u32 4, %s21
        %s279 = smul.u32 4, %s21
        %v280 = vld [vmem:[%s277] sm:$0xff]
        %v281 = vld [vmem:[%s277 + $0x8] sm:$0xff]
        %v282 = vld [vmem:[%s1] sm:$0xff]
        %v283 = vld [vmem:[%s1 + $0x8] sm:$0xff]
        %v284 = vld [vmem:[%s1 + $0x10] sm:$0xff]
        %v285 = vld [vmem:[%s1 + $0x18] sm:$0xff]
        %v286 = vld [vmem:[%s2] sm:$0xff]
        %v287 = vld [vmem:[%s2 + $0x8] sm:$0xff]
        %v288 = vld [vmem:[%s2 + $0x10] sm:$0xff]
        %v289 = vld [vmem:[%s2 + $0x18] sm:$0xff]
        %291 = vset.pattern.permute.xlu0 0
        %292 = vperm.xlu0 %291, %v286
        %v293 = vpop.permute.xlu0 %292
        %296 = vset.pattern.permute.xlu0 0
        %297 = vperm.xlu0 %296, %v287
        %v298 = vpop.permute.xlu0 %297
        %301 = vset.pattern.permute.xlu0 0
        %302 = vperm.xlu0 %301, %v288
        %v303 = vpop.permute.xlu0 %302
        %306 = vset.pattern.permute.xlu0 0
        %307 = vperm.xlu0 %306, %v289
        %v308 = vpop.permute.xlu0 %307
        %v312 = vcombine.high %v280, %v280
        %v313 = vcombine.high %v281, %v281
        %vm314 = vcmask 31744
        %v316 = vsel %vm314, %v282, 0
        %v319 = vsel %vm314, %v283, 0
        %v322 = vsel %vm314, %v284, 0
        %v325 = vsel %vm314, %v285, 0
        %vm327 = vcmask 1043456
        %v328 = vsel %vm327, %v280, 0
        %v330 = vsel %vm327, %v312, 0
        %v332 = vsel %vm327, %v281, 0
        %v334 = vsel %vm327, %v313, 0
        %336 = vmatprep.subr.mxu0 %v330
        %337 = vmatpush1.msra.mxu0 %v328
        %338 = vmatprep.subr.mxu0 0.0
        %339 = vmatpush1.msra.mxu0 0.0
        %340 = vmatprep.subr.mxu0 0.0
        %341 = vmatpush1.msra.mxu0 0.0
        %342 = vmatprep.subr.mxu0 0.0
        %343 = vmatpush1.msra.mxu0 0.0
        %344 = vmatprep.subr.mxu0 0.0
        %345 = vmatpush1.msra.mxu0 0.0
        %346 = vmatprep.subr.mxu0 0.0
        %347 = vmatpush1.msra.mxu0 0.0
        %348 = vmatprep.subr.mxu0 0.0
        %349 = vmatpush1.msra.mxu0 0.0
        %350 = vmatprep.subr.mxu0 0.0
        %351 = vmatpush1.msra.mxu0 0.0
        %352 = vmatprep.subr.mxu0 0.0
        %353 = vmatpush1.msra.mxu0 0.0
        %354 = vmatprep.subr.mxu0 0.0
        %355 = vmatpush1.msra.mxu0 0.0
        %356 = vmatprep.subr.mxu0 0.0
        %357 = vmatpush1.msra.mxu0 0.0
        %358 = vmatprep.subr.mxu0 0.0
        %359 = vmatpush1.msra.mxu0 0.0
        %360 = vmatprep.subr.mxu0 0.0
        %361 = vmatpush1.msra.mxu0 0.0
        %362 = vmatprep.subr.mxu0 0.0
        %363 = vmatpush1.msra.mxu0 0.0
        %364 = vmatprep.subr.mxu0 0.0
        %365 = vmatpush1.msra.mxu0 0.0
        %366 = vmatprep.subr.mxu0 0.0
        %367 = vmatpush1.msra.mxu0 0.0
        %368 = vmatprep.subr.mxu0 0.0
        %369 = vmatpush1.msra.mxu0 0.0
        %370 = vmatprep.subr.mxu0 0.0
        %371 = vmatpush1.msra.mxu0 0.0
        %372 = vmatprep.subr.mxu0 0.0
        %373 = vmatpush1.msra.mxu0 0.0
        %374 = vmatprep.subr.mxu0 0.0
        %375 = vmatpush1.msra.mxu0 0.0
        %376 = vmatprep.subr.mxu0 0.0
        %377 = vmatpush1.msra.mxu0 0.0
        %378 = vmatprep.subr.mxu0 0.0
        %379 = vmatpush1.msra.mxu0 0.0
        %380 = vmatprep.subr.mxu0 0.0
        %381 = vmatpush1.msra.mxu0 0.0
        %382 = vmatprep.subr.mxu0 0.0
        %383 = vmatpush1.msra.mxu0 0.0
        %384 = vmatprep.subr.mxu0 0.0
        %385 = vmatpush1.msra.mxu0 0.0
        %386 = vmatprep.subr.mxu0 0.0
        %387 = vmatpush1.msra.mxu0 0.0
        %388 = vmatprep.subr.mxu0 0.0
        %389 = vmatpush1.msra.mxu0 0.0
        %390 = vmatprep.subr.mxu0 0.0
        %391 = vmatpush1.msra.mxu0 0.0
        %392 = vmatprep.subr.mxu0 0.0
        %393 = vmatpush1.msra.mxu0 0.0
        %394 = vmatprep.subr.mxu0 0.0
        %395 = vmatpush1.msra.mxu0 0.0
        %396 = vmatprep.subr.mxu0 0.0
        %397 = vmatpush1.msra.mxu0 0.0
        %398 = vmatprep.subr.mxu0 0.0
        %399 = vmatpush1.msra.mxu0 0.0
        %400 = vmatprep.mubr.f32.mxu0 0.0
        %401 = vmatmul.mubr.f32.gmra.mrb[0].mxu0 %v316
        %v402 = vpop.f32.mrb[0].mxu0
        %v403 = vadd.f32 %v293, %v402
        %v404 = vpop.f32.mrb[0].mxu0
        %v405 = vadd.f32 %v293, %v404
        %406 = vmatprep.mubr.f32.mxu0 0.0
        %407 = vmatmul.mubr.f32.gmra.mrb[0].mxu0 %v319
        %v408 = vpop.f32.mrb[0].mxu0
        %v409 = vadd.f32 %v298, %v408
        %v410 = vpop.f32.mrb[0].mxu0
        %v411 = vadd.f32 %v298, %v410
        %412 = vmatprep.mubr.f32.mxu0 0.0
        %413 = vmatmul.mubr.f32.gmra.mrb[0].mxu0 %v322
        %v414 = vpop.f32.mrb[0].mxu0
        %v415 = vadd.f32 %v303, %v414
        %v416 = vpop.f32.mrb[0].mxu0
        %v417 = vadd.f32 %v303, %v416
        %418 = vmatprep.mubr.f32.mxu0 0.0
        %419 = vmatmul.mubr.f32.gmra.mrb[0].mxu0 %v325
        %v420 = vpop.f32.mrb[0].mxu0
        %v421 = vadd.f32 %v308, %v420
        %v422 = vpop.f32.mrb[0].mxu0
        %v423 = vadd.f32 %v308, %v422
        %424 = vdwg.mxu0
        %425 = vmatprep.subr.mxu0 %v334
        %426 = vmatpush1.msra.mxu0 %v332
        %427 = vmatprep.subr.mxu0 0.0
        %428 = vmatpush1.msra.mxu0 0.0
        %429 = vmatprep.subr.mxu0 0.0
        %430 = vmatpush1.msra.mxu0 0.0
        %431 = vmatprep.subr.mxu0 0.0
        %432 = vmatpush1.msra.mxu0 0.0
        %433 = vmatprep.subr.mxu0 0.0
        %434 = vmatpush1.msra.mxu0 0.0
        %435 = vmatprep.subr.mxu0 0.0
        %436 = vmatpush1.msra.mxu0 0.0
        %437 = vmatprep.subr.mxu0 0.0
        %438 = vmatpush1.msra.mxu0 0.0
        %439 = vmatprep.subr.mxu0 0.0
        %440 = vmatpush1.msra.mxu0 0.0
        %441 = vmatprep.subr.mxu0 0.0
        %442 = vmatpush1.msra.mxu0 0.0
        %443 = vmatprep.subr.mxu0 0.0
        %444 = vmatpush1.msra.mxu0 0.0
        %445 = vmatprep.subr.mxu0 0.0
        %446 = vmatpush1.msra.mxu0 0.0
        %447 = vmatprep.subr.mxu0 0.0
        %448 = vmatpush1.msra.mxu0 0.0
        %449 = vmatprep.subr.mxu0 0.0
        %450 = vmatpush1.msra.mxu0 0.0
        %451 = vmatprep.subr.mxu0 0.0
        %452 = vmatpush1.msra.mxu0 0.0
        %453 = vmatprep.subr.mxu0 0.0
        %454 = vmatpush1.msra.mxu0 0.0
        %455 = vmatprep.subr.mxu0 0.0
        %456 = vmatpush1.msra.mxu0 0.0
        %457 = vmatprep.subr.mxu0 0.0
        %458 = vmatpush1.msra.mxu0 0.0
        %459 = vmatprep.subr.mxu0 0.0
        %460 = vmatpush1.msra.mxu0 0.0
        %461 = vmatprep.subr.mxu0 0.0
        %462 = vmatpush1.msra.mxu0 0.0
        %463 = vmatprep.subr.mxu0 0.0
        %464 = vmatpush1.msra.mxu0 0.0
        %465 = vmatprep.subr.mxu0 0.0
        %466 = vmatpush1.msra.mxu0 0.0
        %467 = vmatprep.subr.mxu0 0.0
        %468 = vmatpush1.msra.mxu0 0.0
        %469 = vmatprep.subr.mxu0 0.0
        %470 = vmatpush1.msra.mxu0 0.0
        %471 = vmatprep.subr.mxu0 0.0
        %472 = vmatpush1.msra.mxu0 0.0
        %473 = vmatprep.subr.mxu0 0.0
        %474 = vmatpush1.msra.mxu0 0.0
        %475 = vmatprep.subr.mxu0 0.0
        %476 = vmatpush1.msra.mxu0 0.0
        %477 = vmatprep.subr.mxu0 0.0
        %478 = vmatpush1.msra.mxu0 0.0
        %479 = vmatprep.subr.mxu0 0.0
        %480 = vmatpush1.msra.mxu0 0.0
        %481 = vmatprep.subr.mxu0 0.0
        %482 = vmatpush1.msra.mxu0 0.0
        %483 = vmatprep.subr.mxu0 0.0
        %484 = vmatpush1.msra.mxu0 0.0
        %485 = vmatprep.subr.mxu0 0.0
        %486 = vmatpush1.msra.mxu0 0.0
        %487 = vmatprep.subr.mxu0 0.0
        %488 = vmatpush1.msra.mxu0 0.0
        %489 = vmatprep.mubr.f32.mxu0 0.0
        %490 = vmatmul.mubr.f32.gmra.mrb[0].mxu0 %v316
        %v491 = vpop.f32.mrb[0].mxu0
        %v492 = vadd.f32 %v293, %v491
        %v493 = vpop.f32.mrb[0].mxu0
        %v494 = vadd.f32 %v293, %v493
        %495 = vmatprep.mubr.f32.mxu0 0.0
        %496 = vmatmul.mubr.f32.gmra.mrb[0].mxu0 %v319
        %v497 = vpop.f32.mrb[0].mxu0
        %v498 = vadd.f32 %v298, %v497
        %v499 = vpop.f32.mrb[0].mxu0
        %v500 = vadd.f32 %v298, %v499
        %501 = vmatprep.mubr.f32.mxu0 0.0
        %502 = vmatmul.mubr.f32.gmra.mrb[0].mxu0 %v322
        %v503 = vpop.f32.mrb[0].mxu0
        %v504 = vadd.f32 %v303, %v503
        %v505 = vpop.f32.mrb[0].mxu0
        %v506 = vadd.f32 %v303, %v505
        %507 = vmatprep.mubr.f32.mxu0 0.0
        %508 = vmatmul.mubr.f32.gmra.mrb[0].mxu0 %v325
        %v509 = vpop.f32.mrb[0].mxu0
        %v510 = vadd.f32 %v308, %v509
        %v511 = vpop.f32.mrb[0].mxu0
        %v512 = vadd.f32 %v308, %v511
        %513 = vdwg.mxu0
        %v514 = vmul.f32 %v403, 0.01
        %v515 = vmul.f32 %v405, 0.01
        %v516 = vmul.f32 %v492, 0.01
        %v517 = vmul.f32 %v494, 0.01
        %v518 = vmul.f32 %v409, 0.01
        %v519 = vmul.f32 %v411, 0.01
        %v520 = vmul.f32 %v498, 0.01
        %v521 = vmul.f32 %v500, 0.01
        %v522 = vmul.f32 %v415, 0.01
        %v523 = vmul.f32 %v417, 0.01
        %v524 = vmul.f32 %v504, 0.01
        %v525 = vmul.f32 %v506, 0.01
        %v526 = vmul.f32 %v421, 0.01
        %v527 = vmul.f32 %v423, 0.01
        %v528 = vmul.f32 %v510, 0.01
        %v529 = vmul.f32 %v512, 0.01
        %v530 = vmax.f32 %v403, %v514
        %v531 = vmax.f32 %v405, %v515
        %v532 = vmax.f32 %v492, %v516
        %v533 = vmax.f32 %v494, %v517
        %v534 = vmax.f32 %v409, %v518
        %v535 = vmax.f32 %v411, %v519
        %v536 = vmax.f32 %v498, %v520
        %v537 = vmax.f32 %v500, %v521
        %v538 = vmax.f32 %v415, %v522
        %v539 = vmax.f32 %v417, %v523
        %v540 = vmax.f32 %v504, %v524
        %v541 = vmax.f32 %v506, %v525
        %v542 = vmax.f32 %v421, %v526
        %v543 = vmax.f32 %v423, %v527
        %v544 = vmax.f32 %v510, %v528
        %v545 = vmax.f32 %v512, %v529
        %v546 = vld [vmem:[%s3] sm:$0xff]
        %v547 = vld [vmem:[%s3 + $0x8] sm:$0xff]
        %v548 = vld [vmem:[%s3 + $0x10] sm:$0xff]
        %v549 = vld [vmem:[%s3 + $0x18] sm:$0xff]
        %v550 = vld [vmem:[%s4] sm:$0xff]
        %v551 = vld [vmem:[%s4 + $0x8] sm:$0xff]
        %v552 = vld [vmem:[%s4 + $0x10] sm:$0xff]
        %v553 = vld [vmem:[%s4 + $0x18] sm:$0xff]
        %555 = vset.pattern.permute.xlu0 0
        %556 = vperm.xlu0 %555, %v550
        %v557 = vpop.permute.xlu0 %556
        %560 = vset.pattern.permute.xlu0 0
        %561 = vperm.xlu0 %560, %v551
        %v562 = vpop.permute.xlu0 %561
        %565 = vset.pattern.permute.xlu0 0
        %566 = vperm.xlu0 %565, %v552
        %v567 = vpop.permute.xlu0 %566
        %570 = vset.pattern.permute.xlu0 0
        %571 = vperm.xlu0 %570, %v553
        %v572 = vpop.permute.xlu0 %571
        %vm574 = vcmask 261120
        %v576 = vsel %vm574, %v546, 0
        %v579 = vsel %vm574, %v547, 0
        %v582 = vsel %vm574, %v548, 0
        %v585 = vsel %vm574, %v549, 0
        %587 = vmatprep.subr.mxu0 %v531
        %588 = vmatpush1.msra.mxu0 %v530
        %589 = vmatprep.subr.mxu0 %v535
        %590 = vmatpush1.msra.mxu0 %v534
        %591 = vmatprep.subr.mxu0 %v539
        %592 = vmatpush1.msra.mxu0 %v538
        %593 = vmatprep.subr.mxu0 %v543
        %594 = vmatpush1.msra.mxu0 %v542
        %595 = vmatprep.subr.mxu0 0.0
        %596 = vmatpush1.msra.mxu0 0.0
        %597 = vmatprep.subr.mxu0 0.0
        %598 = vmatpush1.msra.mxu0 0.0
        %599 = vmatprep.subr.mxu0 0.0
        %600 = vmatpush1.msra.mxu0 0.0
        %601 = vmatprep.subr.mxu0 0.0
        %602 = vmatpush1.msra.mxu0 0.0
        %603 = vmatprep.subr.mxu0 0.0
        %604 = vmatpush1.msra.mxu0 0.0
        %605 = vmatprep.subr.mxu0 0.0
        %606 = vmatpush1.msra.mxu0 0.0
        %607 = vmatprep.subr.mxu0 0.0
        %608 = vmatpush1.msra.mxu0 0.0
        %609 = vmatprep.subr.mxu0 0.0
        %610 = vmatpush1.msra.mxu0 0.0
        %611 = vmatprep.subr.mxu0 0.0
        %612 = vmatpush1.msra.mxu0 0.0
        %613 = vmatprep.subr.mxu0 0.0
        %614 = vmatpush1.msra.mxu0 0.0
        %615 = vmatprep.subr.mxu0 0.0
        %616 = vmatpush1.msra.mxu0 0.0
        %617 = vmatprep.subr.mxu0 0.0
        %618 = vmatpush1.msra.mxu0 0.0
        %619 = vmatprep.subr.mxu0 0.0
        %620 = vmatpush1.msra.mxu0 0.0
        %621 = vmatprep.subr.mxu0 0.0
        %622 = vmatpush1.msra.mxu0 0.0
        %623 = vmatprep.subr.mxu0 0.0
        %624 = vmatpush1.msra.mxu0 0.0
        %625 = vmatprep.subr.mxu0 0.0
        %626 = vmatpush1.msra.mxu0 0.0
        %627 = vmatprep.subr.mxu0 0.0
        %628 = vmatpush1.msra.mxu0 0.0
        %629 = vmatprep.subr.mxu0 0.0
        %630 = vmatpush1.msra.mxu0 0.0
        %631 = vmatprep.subr.mxu0 0.0
        %632 = vmatpush1.msra.mxu0 0.0
        %633 = vmatprep.subr.mxu0 0.0
        %634 = vmatpush1.msra.mxu0 0.0
        %635 = vmatprep.subr.mxu0 0.0
        %636 = vmatpush1.msra.mxu0 0.0
        %637 = vmatprep.subr.mxu0 0.0
        %638 = vmatpush1.msra.mxu0 0.0
        %639 = vmatprep.subr.mxu0 0.0
        %640 = vmatpush1.msra.mxu0 0.0
        %641 = vmatprep.subr.mxu0 0.0
        %642 = vmatpush1.msra.mxu0 0.0
        %643 = vmatprep.subr.mxu0 0.0
        %644 = vmatpush1.msra.mxu0 0.0
        %645 = vmatprep.subr.mxu0 0.0
        %646 = vmatpush1.msra.mxu0 0.0
        %647 = vmatprep.subr.mxu0 0.0
        %648 = vmatpush1.msra.mxu0 0.0
        %649 = vmatprep.subr.mxu0 0.0
        %650 = vmatpush1.msra.mxu0 0.0
        %651 = vmatprep.mubr.f32.mxu0 0.0
        %652 = vmatmul.mubr.f32.gmra.mrb[0].mxu0 %v576
        %v653 = vpop.f32.mrb[0].mxu0
        %v654 = vadd.f32 %v557, %v653
        %v655 = vpop.f32.mrb[0].mxu0
        %v656 = vadd.f32 %v557, %v655
        %657 = vmatprep.mubr.f32.mxu0 0.0
        %658 = vmatmul.mubr.f32.gmra.mrb[0].mxu0 %v579
        %v659 = vpop.f32.mrb[0].mxu0
        %v660 = vadd.f32 %v562, %v659
        %v661 = vpop.f32.mrb[0].mxu0
        %v662 = vadd.f32 %v562, %v661
        %663 = vmatprep.mubr.f32.mxu0 0.0
        %664 = vmatmul.mubr.f32.gmra.mrb[0].mxu0 %v582
        %v665 = vpop.f32.mrb[0].mxu0
        %v666 = vadd.f32 %v567, %v665
        %v667 = vpop.f32.mrb[0].mxu0
        %v668 = vadd.f32 %v567, %v667
        %669 = vmatprep.mubr.f32.mxu0 0.0
        %670 = vmatmul.mubr.f32.gmra.mrb[0].mxu0 %v585
        %v671 = vpop.f32.mrb[0].mxu0
        %v672 = vadd.f32 %v572, %v671
        %v673 = vpop.f32.mrb[0].mxu0
        %v674 = vadd.f32 %v572, %v673
        %675 = vdwg.mxu0
        %676 = vmatprep.subr.mxu0 %v533
        %677 = vmatpush1.msra.mxu0 %v532
        %678 = vmatprep.subr.mxu0 %v537
        %679 = vmatpush1.msra.mxu0 %v536
        %680 = vmatprep.subr.mxu0 %v541
        %681 = vmatpush1.msra.mxu0 %v540
        %682 = vmatprep.subr.mxu0 %v545
        %683 = vmatpush1.msra.mxu0 %v544
        %684 = vmatprep.subr.mxu0 0.0
        %685 = vmatpush1.msra.mxu0 0.0
        %686 = vmatprep.subr.mxu0 0.0
        %687 = vmatpush1.msra.mxu0 0.0
        %688 = vmatprep.subr.mxu0 0.0
        %689 = vmatpush1.msra.mxu0 0.0
        %690 = vmatprep.subr.mxu0 0.0
        %691 = vmatpush1.msra.mxu0 0.0
        %692 = vmatprep.subr.mxu0 0.0
        %693 = vmatpush1.msra.mxu0 0.0
        %694 = vmatprep.subr.mxu0 0.0
        %695 = vmatpush1.msra.mxu0 0.0
        %696 = vmatprep.subr.mxu0 0.0
        %697 = vmatpush1.msra.mxu0 0.0
        %698 = vmatprep.subr.mxu0 0.0
        %699 = vmatpush1.msra.mxu0 0.0
        %700 = vmatprep.subr.mxu0 0.0
        %701 = vmatpush1.msra.mxu0 0.0
        %702 = vmatprep.subr.mxu0 0.0
        %703 = vmatpush1.msra.mxu0 0.0
        %704 = vmatprep.subr.mxu0 0.0
        %705 = vmatpush1.msra.mxu0 0.0
        %706 = vmatprep.subr.mxu0 0.0
        %707 = vmatpush1.msra.mxu0 0.0
        %708 = vmatprep.subr.mxu0 0.0
        %709 = vmatpush1.msra.mxu0 0.0
        %710 = vmatprep.subr.mxu0 0.0
        %711 = vmatpush1.msra.mxu0 0.0
        %712 = vmatprep.subr.mxu0 0.0
        %713 = vmatpush1.msra.mxu0 0.0
        %714 = vmatprep.subr.mxu0 0.0
        %715 = vmatpush1.msra.mxu0 0.0
        %716 = vmatprep.subr.mxu0 0.0
        %717 = vmatpush1.msra.mxu0 0.0
        %718 = vmatprep.subr.mxu0 0.0
        %719 = vmatpush1.msra.mxu0 0.0
        %720 = vmatprep.subr.mxu0 0.0
        %721 = vmatpush1.msra.mxu0 0.0
        %722 = vmatprep.subr.mxu0 0.0
        %723 = vmatpush1.msra.mxu0 0.0
        %724 = vmatprep.subr.mxu0 0.0
        %725 = vmatpush1.msra.mxu0 0.0
        %726 = vmatprep.subr.mxu0 0.0
        %727 = vmatpush1.msra.mxu0 0.0
        %728 = vmatprep.subr.mxu0 0.0
        %729 = vmatpush1.msra.mxu0 0.0
        %730 = vmatprep.subr.mxu0 0.0
        %731 = vmatpush1.msra.mxu0 0.0
        %732 = vmatprep.subr.mxu0 0.0
        %733 = vmatpush1.msra.mxu0 0.0
        %734 = vmatprep.subr.mxu0 0.0
        %735 = vmatpush1.msra.mxu0 0.0
        %736 = vmatprep.subr.mxu0 0.0
        %737 = vmatpush1.msra.mxu0 0.0
        %738 = vmatprep.subr.mxu0 0.0
        %739 = vmatpush1.msra.mxu0 0.0
        %740 = vmatprep.mubr.f32.mxu0 0.0
        %741 = vmatmul.mubr.f32.gmra.mrb[0].mxu0 %v576
        %v742 = vpop.f32.mrb[0].mxu0
        %v743 = vadd.f32 %v557, %v742
        %v744 = vpop.f32.mrb[0].mxu0
        %v745 = vadd.f32 %v557, %v744
        %746 = vmatprep.mubr.f32.mxu0 0.0
        %747 = vmatmul.mubr.f32.gmra.mrb[0].mxu0 %v579
        %v748 = vpop.f32.mrb[0].mxu0
        %v749 = vadd.f32 %v562, %v748
        %v750 = vpop.f32.mrb[0].mxu0
        %v751 = vadd.f32 %v562, %v750
        %752 = vmatprep.mubr.f32.mxu0 0.0
        %753 = vmatmul.mubr.f32.gmra.mrb[0].mxu0 %v582
        %v754 = vpop.f32.mrb[0].mxu0
        %v755 = vadd.f32 %v567, %v754
        %v756 = vpop.f32.mrb[0].mxu0
        %v757 = vadd.f32 %v567, %v756
        %758 = vmatprep.mubr.f32.mxu0 0.0
        %759 = vmatmul.mubr.f32.gmra.mrb[0].mxu0 %v585
        %v760 = vpop.f32.mrb[0].mxu0
        %v761 = vadd.f32 %v572, %v760
        %v762 = vpop.f32.mrb[0].mxu0
        %v763 = vadd.f32 %v572, %v762
        %764 = vdwg.mxu0
        %v765 = vmul.f32 %v654, 0.01
        %v766 = vmul.f32 %v656, 0.01
        %v767 = vmul.f32 %v743, 0.01
        %v768 = vmul.f32 %v745, 0.01
        %v769 = vmul.f32 %v660, 0.01
        %v770 = vmul.f32 %v662, 0.01
        %v771 = vmul.f32 %v749, 0.01
        %v772 = vmul.f32 %v751, 0.01
        %v773 = vmul.f32 %v666, 0.01
        %v774 = vmul.f32 %v668, 0.01
        %v775 = vmul.f32 %v755, 0.01
        %v776 = vmul.f32 %v757, 0.01
        %v777 = vmul.f32 %v672, 0.01
        %v778 = vmul.f32 %v674, 0.01
        %v779 = vmul.f32 %v761, 0.01
        %v780 = vmul.f32 %v763, 0.01
        %v781 = vmax.f32 %v654, %v765
        %v782 = vmax.f32 %v656, %v766
        %v783 = vmax.f32 %v743, %v767
        %v784 = vmax.f32 %v745, %v768
        %v785 = vmax.f32 %v660, %v769
        %v786 = vmax.f32 %v662, %v770
        %v787 = vmax.f32 %v749, %v771
        %v788 = vmax.f32 %v751, %v772
        %v789 = vmax.f32 %v666, %v773
        %v790 = vmax.f32 %v668, %v774
        %v791 = vmax.f32 %v755, %v775
        %v792 = vmax.f32 %v757, %v776
        %v793 = vmax.f32 %v672, %v777
        %v794 = vmax.f32 %v674, %v778
        %v795 = vmax.f32 %v761, %v779
        %v796 = vmax.f32 %v763, %v780
        %v797 = vld [vmem:[%s5] sm:$0x7]
        %v798 = vld [vmem:[%s6] sm:$0x7]
        %800 = vset.pattern.permute.xlu0 0
        %801 = vperm.xlu0 %800, %v798
        %v802 = vpop.permute.xlu0 %801
        %v805 = vsel %vm574, %v797, 0
        %807 = vmatprep.subr.mxu0 %v782
        %808 = vmatpush1.msra.mxu0 %v781
        %809 = vmatprep.subr.mxu0 %v786
        %810 = vmatpush1.msra.mxu0 %v785
        %811 = vmatprep.subr.mxu0 %v790
        %812 = vmatpush1.msra.mxu0 %v789
        %813 = vmatprep.subr.mxu0 %v794
        %814 = vmatpush1.msra.mxu0 %v793
        %815 = vmatprep.subr.mxu0 0.0
        %816 = vmatpush1.msra.mxu0 0.0
        %817 = vmatprep.subr.mxu0 0.0
        %818 = vmatpush1.msra.mxu0 0.0
        %819 = vmatprep.subr.mxu0 0.0
        %820 = vmatpush1.msra.mxu0 0.0
        %821 = vmatprep.subr.mxu0 0.0
        %822 = vmatpush1.msra.mxu0 0.0
        %823 = vmatprep.subr.mxu0 0.0
        %824 = vmatpush1.msra.mxu0 0.0
        %825 = vmatprep.subr.mxu0 0.0
        %826 = vmatpush1.msra.mxu0 0.0
        %827 = vmatprep.subr.mxu0 0.0
        %828 = vmatpush1.msra.mxu0 0.0
        %829 = vmatprep.subr.mxu0 0.0
        %830 = vmatpush1.msra.mxu0 0.0
        %831 = vmatprep.subr.mxu0 0.0
        %832 = vmatpush1.msra.mxu0 0.0
        %833 = vmatprep.subr.mxu0 0.0
        %834 = vmatpush1.msra.mxu0 0.0
        %835 = vmatprep.subr.mxu0 0.0
        %836 = vmatpush1.msra.mxu0 0.0
        %837 = vmatprep.subr.mxu0 0.0
        %838 = vmatpush1.msra.mxu0 0.0
        %839 = vmatprep.subr.mxu0 0.0
        %840 = vmatpush1.msra.mxu0 0.0
        %841 = vmatprep.subr.mxu0 0.0
        %842 = vmatpush1.msra.mxu0 0.0
        %843 = vmatprep.subr.mxu0 0.0
        %844 = vmatpush1.msra.mxu0 0.0
        %845 = vmatprep.subr.mxu0 0.0
        %846 = vmatpush1.msra.mxu0 0.0
        %847 = vmatprep.subr.mxu0 0.0
        %848 = vmatpush1.msra.mxu0 0.0
        %849 = vmatprep.subr.mxu0 0.0
        %850 = vmatpush1.msra.mxu0 0.0
        %851 = vmatprep.subr.mxu0 0.0
        %852 = vmatpush1.msra.mxu0 0.0
        %853 = vmatprep.subr.mxu0 0.0
        %854 = vmatpush1.msra.mxu0 0.0
        %855 = vmatprep.subr.mxu0 0.0
        %856 = vmatpush1.msra.mxu0 0.0
        %857 = vmatprep.subr.mxu0 0.0
        %858 = vmatpush1.msra.mxu0 0.0
        %859 = vmatprep.subr.mxu0 0.0
        %860 = vmatpush1.msra.mxu0 0.0
        %861 = vmatprep.subr.mxu0 0.0
        %862 = vmatpush1.msra.mxu0 0.0
        %863 = vmatprep.subr.mxu0 0.0
        %864 = vmatpush1.msra.mxu0 0.0
        %865 = vmatprep.subr.mxu0 0.0
        %866 = vmatpush1.msra.mxu0 0.0
        %867 = vmatprep.subr.mxu0 0.0
        %868 = vmatpush1.msra.mxu0 0.0
        %869 = vmatprep.subr.mxu0 0.0
        %870 = vmatpush1.msra.mxu0 0.0
        %871 = vmatprep.mubr.f32.mxu0 0.0
        %872 = vmatmul.mubr.f32.gmra.mrb[0].mxu0 %v805
        %v873 = vpop.f32.mrb[0].mxu0
        %v874 = vadd.f32 %v802, %v873
        %v875 = vpop.f32.mrb[0].mxu0
        %v876 = vadd.f32 %v802, %v875
        %877 = vdwg.mxu0
        %878 = vmatprep.subr.mxu0 %v784
        %879 = vmatpush1.msra.mxu0 %v783
        %880 = vmatprep.subr.mxu0 %v788
        %881 = vmatpush1.msra.mxu0 %v787
        %882 = vmatprep.subr.mxu0 %v792
        %883 = vmatpush1.msra.mxu0 %v791
        %884 = vmatprep.subr.mxu0 %v796
        %885 = vmatpush1.msra.mxu0 %v795
        %886 = vmatprep.subr.mxu0 0.0
        %887 = vmatpush1.msra.mxu0 0.0
        %888 = vmatprep.subr.mxu0 0.0
        %889 = vmatpush1.msra.mxu0 0.0
        %890 = vmatprep.subr.mxu0 0.0
        %891 = vmatpush1.msra.mxu0 0.0
        %892 = vmatprep.subr.mxu0 0.0
        %893 = vmatpush1.msra.mxu0 0.0
        %894 = vmatprep.subr.mxu0 0.0
        %895 = vmatpush1.msra.mxu0 0.0
        %896 = vmatprep.subr.mxu0 0.0
        %897 = vmatpush1.msra.mxu0 0.0
        %898 = vmatprep.subr.mxu0 0.0
        %899 = vmatpush1.msra.mxu0 0.0
        %900 = vmatprep.subr.mxu0 0.0
        %901 = vmatpush1.msra.mxu0 0.0
        %902 = vmatprep.subr.mxu0 0.0
        %903 = vmatpush1.msra.mxu0 0.0
        %904 = vmatprep.subr.mxu0 0.0
        %905 = vmatpush1.msra.mxu0 0.0
        %906 = vmatprep.subr.mxu0 0.0
        %907 = vmatpush1.msra.mxu0 0.0
        %908 = vmatprep.subr.mxu0 0.0
        %909 = vmatpush1.msra.mxu0 0.0
        %910 = vmatprep.subr.mxu0 0.0
        %911 = vmatpush1.msra.mxu0 0.0
        %912 = vmatprep.subr.mxu0 0.0
        %913 = vmatpush1.msra.mxu0 0.0
        %914 = vmatprep.subr.mxu0 0.0
        %915 = vmatpush1.msra.mxu0 0.0
        %916 = vmatprep.subr.mxu0 0.0
        %917 = vmatpush1.msra.mxu0 0.0
        %918 = vmatprep.subr.mxu0 0.0
        %919 = vmatpush1.msra.mxu0 0.0
        %920 = vmatprep.subr.mxu0 0.0
        %921 = vmatpush1.msra.mxu0 0.0
        %922 = vmatprep.subr.mxu0 0.0
        %923 = vmatpush1.msra.mxu0 0.0
        %924 = vmatprep.subr.mxu0 0.0
        %925 = vmatpush1.msra.mxu0 0.0
        %926 = vmatprep.subr.mxu0 0.0
        %927 = vmatpush1.msra.mxu0 0.0
        %928 = vmatprep.subr.mxu0 0.0
        %929 = vmatpush1.msra.mxu0 0.0
        %930 = vmatprep.subr.mxu0 0.0
        %931 = vmatpush1.msra.mxu0 0.0
        %932 = vmatprep.subr.mxu0 0.0
        %933 = vmatpush1.msra.mxu0 0.0
        %934 = vmatprep.subr.mxu0 0.0
        %935 = vmatpush1.msra.mxu0 0.0
        %936 = vmatprep.subr.mxu0 0.0
        %937 = vmatpush1.msra.mxu0 0.0
        %938 = vmatprep.subr.mxu0 0.0
        %939 = vmatpush1.msra.mxu0 0.0
        %940 = vmatprep.subr.mxu0 0.0
        %941 = vmatpush1.msra.mxu0 0.0
        %942 = vmatprep.mubr.f32.mxu0 0.0
        %943 = vmatmul.mubr.f32.gmra.mrb[0].mxu0 %v805
        %v944 = vpop.f32.mrb[0].mxu0
        %v945 = vadd.f32 %v802, %v944
        %v946 = vpop.f32.mrb[0].mxu0
        %v947 = vadd.f32 %v802, %v946
        %948 = vdwg.mxu0
        %v953 = vcombine.low %v874, %v876
        %v954 = vcombine.low %v945, %v947
        %957 = vst [vmem:[%s272] sm:$0x77] %v953
        %958 = vst [vmem:[%s272 + $0x8] sm:$0x77] %v954
        %s959 = sand.u32 %s181, 1
        %s960 = scalar_lea.sflag [#allocation3], %s959
        %s961 = sand.u32 %s181, 1
        %s962 = smul.addr %s961, 16
        %s963 = scalar_lea.vmem [#allocation2], %s962
        // Predicated region
        $region49: #{vanilla_mlp_pallas.1} parent=47 // pred_check
          %p964 = pneg %p191
        $region50: #{vanilla_mlp_pallas.1} parent=47 // pred_check_branch
          %966 = sbr.rel (%p964) target = $region52
        $region51: #{vanilla_mlp_pallas.1} parent=47 // pred_region
          %s967 = smul.u32 4, %s21
          %s969 = ssub.s32 256, 256
          %970 = vsyncadd %s960, %s969
          %s971 = smul.addr %s967, 64
          %s972 = scalar_lea.hbm %s7, %s971
          %s974 = sshll.u32 %s963, 4
          %s975 = int_to_ptr.vmem [resolvable:$true] %s974
          %977 = dma.vmem_to_hbm [thread:$0]  %s975, 256, %s972, %s960
        $region52: #{vanilla_mlp_pallas.1} parent=47 // pred_fallthru
          _
      $region48: #{vanilla_mlp_pallas.1} parent=5 // pred_fallthru
        _
      %p978 = scmp.le.s32.totalorder 2, %s16
      // Predicated region
      $region53: #{vanilla_mlp_pallas.1} parent=5 // pred_check
        %p979 = pneg %p978
      $region54: #{vanilla_mlp_pallas.1} parent=5 // pred_check_branch
        %981 = sbr.rel (%p979) target = $region56
      $region55: #{vanilla_mlp_pallas.1} parent=5 // pred_region
        %s982 = ssub.s32 %s16, 2
        // Predicated region
        $region57: #{vanilla_mlp_pallas.1} parent=55 // pred_check
          %p983 = pneg %p197
        $region58: #{vanilla_mlp_pallas.1} parent=55 // pred_check_branch
          %985 = sbr.rel (%p983) target = $region60
        $region59: #{vanilla_mlp_pallas.1} parent=55 // pred_region
          %s986 = sand.u32 %s182, 1
          %s987 = scalar_lea.sflag [#allocation3], %s986
          %s988 = sand.u32 %s182, 1
          %s989 = smul.addr %s988, 16
          %s990 = scalar_lea.vmem [#allocation2], %s989
          %991 = dma.done %s987, 256
        $region60: #{vanilla_mlp_pallas.1} parent=55 // pred_fallthru
          _
      $region56: #{vanilla_mlp_pallas.1} parent=5 // pred_fallthru
        _
    $region6: #{vanilla_mlp_pallas.1} parent=1 // loop_footer
      %s20 = sadd.s32 1, %s16
    $region7: #{vanilla_mlp_pallas.1} parent=1 // loop_footer_branch
      %15 = sbr.rel target = $region3
    $region8: #{vanilla_mlp_pallas.1} parent=1 // loop_exit
      _
    %992 = vsyncpa [#allocation3], 1
    %s993 = scalar_lea.sflag [#allocation3], 1
    %994 = vsyncpa %s993, 1

</llo_original>
